<compile_context>
chip_gen: v6e
topology: v6e:2x2x1
jax: 0.10.0
libtpu: 0.0.40
codegen_flags: <defaults>
</compile_context>

<pallas_src>
import functools

import jax
import jax.numpy as jnp
import numpy as np
from jax.experimental import pallas as pl
from jax.experimental.pallas import tpu as pltpu

_LANE = 128
_SUBLANE = 8
# Merged (src | dst) block budget: ~4 MiB per logical output, ~8 MiB per block.
_BLOCK_BYTES_BUDGET = 8 << 20
# Explicit scoped-VMEM limit: 2 buffers x <=8 MiB block + scratch headroom.
# <= physical VMEM on every generation (v5e/v6e 128 MiB, v7x 64 MiB per TC).
_VMEM_LIMIT_BYTES = 32 << 20


def _round_up(x: int, m: int) -> int:
    return (x + m - 1) // m * m


def _fc_tile_kernel(node_off_ref, row_start_ref, out_ref, *, m_pad, keep_loops):
    """Fill one lane-dense (ROWS, 2*M_PAD) tile: [src | dst] node indices.

    Work item t covers local adjacency rows [row_start, row_start + ROWS) of a
    single graph whose cumulative node offset is `off`.  Entry (p, r):
        local row  i = row_start + p
        local col  j = r                    (keep_loops)
                   j = r + (r >= i)         (diagonal skipped)
    src = i + off goes to lanes [0, m_pad); dst = j + off to lanes
    [m_pad, 2*m_pad).  Rows >= n_g and columns >= m_g are padding; the wrapper
    never reads them.
    """
    t = pl.program_id(0)
    off = node_off_ref[t]
    row0 = row_start_ref[t]
    rows = out_ref.shape[0]

    i_loc = row0 + jax.lax.broadcasted_iota(jnp.int32, (rows, m_pad), 0)
    r = jax.lax.broadcasted_iota(jnp.int32, (rows, m_pad), 1)

    out_ref[:, :m_pad] = i_loc + off
    if keep_loops:
        out_ref[:, m_pad:] = r + off
    else:
        out_ref[:, m_pad:] = r + off + (r >= i_loc).astype(jnp.int32)


def fully_connected(num_nodes, keep_loops: bool = False):
    """num_nodes: sequence of static Python ints (per-graph node counts)."""
    num_nodes = tuple(int(n) for n in num_nodes)

    # ---- static (host-side) bookkeeping -------------------------------------
    offsets, total = [], 0
    for n in num_nodes:
        offsets.append(total)
        total += n
    assert total < 2**31, "cumulative node offset overflows int32"

    num_edges_list = []
    graphs = []  # (graph_idx, n, m, node_offset) for graphs with >= 1 edge
    for g, n in enumerate(num_nodes):
        assert n < 46341, "int32 edge-count overflow (n*n) for this graph"
        m = n if keep_loops else n - 1
        e = n * m if m > 0 else 0
        num_edges_list.append(e)
        if e > 0:
            graphs.append((g, n, m, offsets[g]))
    num_edges = jnp.asarray(num_edges_list, dtype=jnp.int32)

    if not graphs:
        return jnp.zeros((0, 2), jnp.int32), num_edges

    # Bucket active graphs by padded column width (limits write amplification
    # on heterogeneous batches); one fused pallas_call per bucket.
    buckets = {}
    for g, n, m, noff in graphs:
        buckets.setdefault(_round_up(m, _LANE), []).append((g, n, m, noff))

    graph_slices = {}    # g -> (m_pad, out_row0, n, m)
    bucket_outputs = {}  # m_pad -> merged (rows_total, 2*m_pad) int32 array

    for m_pad, members in sorted(buckets.items()):
        max_n = max(mm[1] for mm in members)
        # Row-tile: multiple of 8, sized so one merged block is <= ~8 MiB,
        # capped at the bucket's tallest graph.
        rows = max(_SUBLANE,
                   (_BLOCK_BYTES_BUDGET // (4 * 2 * m_pad)) // _SUBLANE * _SUBLANE)
        rows = min(rows, _round_up(max_n, _SUBLANE))

        # Flattened work-item list: item t = (graph, row-chunk).  Item t writes
        # output block t, so the output index_map is simply t -> (t, 0), and a
        # graph's rows are contiguous in the output.
        node_off_items, row_start_items = [], []
        for g, n, m, noff in members:
            graph_slices[g] = (m_pad, len(node_off_items) * rows, n, m)
            for c in range((n + rows - 1) // rows):
                node_off_items.append(noff)
                row_start_items.append(c * rows)
        num_items = len(node_off_items)

        kernel = functools.partial(_fc_tile_kernel, m_pad=m_pad,
                                   keep_loops=keep_loops)
        out = pl.pallas_call(
            kernel,
            out_shape=jax.ShapeDtypeStruct((num_items * rows, 2 * m_pad),
                                           jnp.int32),
            grid_spec=pltpu.PrefetchScalarGridSpec(
                num_scalar_prefetch=2,
                grid=(num_items,),
                in_specs=[],
                out_specs=pl.BlockSpec((rows, 2 * m_pad),
                                       lambda t, noff, rstart: (t, 0)),
            ),
            compiler_params=pltpu.CompilerParams(
                dimension_semantics=("parallel",),
                vmem_limit_bytes=_VMEM_LIMIT_BYTES),
        )(jnp.asarray(node_off_items, dtype=jnp.int32),
          jnp.asarray(row_start_items, dtype=jnp.int32))
        bucket_outputs[m_pad] = out

    # ---- layout plumbing (static slices only): strip padding, flatten -------
    src_parts, dst_parts = [], []
    for g, n, m, _ in graphs:
        m_pad, r0, _, _ = graph_slices[g]
        out = bucket_outputs[m_pad]
        src_parts.append(out[r0:r0 + n, :m].reshape(-1))
        dst_parts.append(out[r0:r0 + n, m_pad:m_pad + m].reshape(-1))
    edge_index = jnp.stack(
        [jnp.concatenate(src_parts), jnp.concatenate(dst_parts)], axis=1)
    return edge_index, num_edges


class FullyConnected:
    """JAX/Pallas mirror of the PyTorch FullyConnected connectivity module."""

    def __init__(self, keep_loops: bool = False):
        self.keep_loops = keep_loops

    def __call__(self, inputs: dict) -> dict:
        edge_index, num_edges = fully_connected(
            inputs["num_nodes"], keep_loops=self.keep_loops)
        out = dict(inputs)
        out["edge_index"] = edge_index
        out["num_edges"] = num_edges
        return out


def _reference(num_nodes, keep_loops=False):
    out, ne, offset = [], [], 0
    for n in num_nodes:
        adj = np.ones((n, n), dtype=bool)
        if not keep_loops:
            np.fill_diagonal(adj, False)
        ei = offset + np.argwhere(adj)
        out.append(ei.reshape(-1, 2))
        ne.append(len(ei))
        offset += n
    return (np.concatenate(out, axis=0).astype(np.int32),
            np.asarray(ne, np.int32))


if __name__ == "__main__":
    # Batch 1: small graphs (incl. a 1-node graph -> 0 edges without loops).
    # Batch 2: heterogeneous sizes exercising two column buckets (128 / 256)
    # and the merged src|dst output layout.
    test_batches = ((4, 3, 1, 5), (130, 5, 64))

    for num_nodes in test_batches:
        total_nodes = sum(num_nodes)
        key = jax.random.PRNGKey(0)
        x = jax.random.normal(key, (total_nodes, 8), dtype=jnp.float32)
        batch = {"x": x, "num_nodes": num_nodes}

        for keep_loops in (False, True):
            module = FullyConnected(keep_loops=keep_loops)
            out = module(batch)
            edge_index = jax.block_until_ready(out["edge_index"])
            num_edges = jax.block_until_ready(out["num_edges"])

            ref_ei, ref_ne = _reference(num_nodes, keep_loops=keep_loops)
            assert edge_index.shape == ref_ei.shape, (edge_index.shape,
                                                      ref_ei.shape)
            np.testing.assert_array_equal(np.asarray(edge_index), ref_ei)
            np.testing.assert_array_equal(np.asarray(num_edges), ref_ne)

    print("KERNEL_OK")
</pallas_src>

<mosaic_0001>
module attributes {stable_mosaic.version = 11 : i64} {
  func.func @_fc_tile_kernel(%arg0: i32, %arg1: memref<3xi32, #tpu.memory_space<smem>>, %arg2: memref<3xi32, #tpu.memory_space<smem>>, %arg3: memref<8x256xi32, #tpu.memory_space<vmem>>) attributes {dimension_semantics = [#tpu.dimension_semantics<parallel>], iteration_bounds = array<i64: 3>, scalar_prefetch = 2 : i64, scratch_operands = 0 : i64, tpu.core_type = #tpu.core_type<tc>, window_params = [{transform_indices = @transform_0, window_bounds = array<i64: 8, 256>}]} {
    %0 = arith.index_cast %arg0 : i32 to index
    %1 = memref.load %arg1[%0] : memref<3xi32, #tpu.memory_space<smem>>
    %2 = arith.index_cast %arg0 : i32 to index
    %3 = memref.load %arg2[%2] : memref<3xi32, #tpu.memory_space<smem>>
    %4 = tpu.iota {dimensions = array<i32: 0>} : vector<8x128xi32>
    %5 = vector.broadcast %3 : i32 to vector<8x128xi32>
    %6 = arith.addi %5, %4 : vector<8x128xi32>
    %7 = tpu.iota {dimensions = array<i32: 1>} : vector<8x128xi32>
    %8 = vector.broadcast %1 : i32 to vector<8x128xi32>
    %9 = arith.addi %6, %8 : vector<8x128xi32>
    %c0 = arith.constant 0 : index
    %c0_0 = arith.constant 0 : index
    %10 = vector.load %arg3[%c0, %c0_0] : memref<8x256xi32, #tpu.memory_space<vmem>>, vector<8x128xi32>
    tpu.vector_store %arg3[%c0, %c0_0], %9 {strides = array<i32>} : memref<8x256xi32, #tpu.memory_space<vmem>>, vector<8x128xi32>,
    %11 = vector.broadcast %1 : i32 to vector<8x128xi32>
    %12 = arith.addi %7, %11 : vector<8x128xi32>
    %13 = arith.cmpi sge, %7, %6 : vector<8x128xi32>
    %14 = arith.extui %13 : vector<8x128xi1> to vector<8x128xi32>
    %15 = arith.addi %12, %14 : vector<8x128xi32>
    %c0_1 = arith.constant 0 : index
    %c128 = arith.constant 128 : index
    %16 = vector.load %arg3[%c0_1, %c128] : memref<8x256xi32, #tpu.memory_space<vmem>>, vector<8x128xi32>
    tpu.vector_store %arg3[%c0_1, %c128], %15 {strides = array<i32>} : memref<8x256xi32, #tpu.memory_space<vmem>>, vector<8x128xi32>,
    return
  }
  func.func @transform_0(%arg0: i32, %arg1: memref<3xi32, #tpu.memory_space<smem>>, %arg2: memref<3xi32, #tpu.memory_space<smem>>) -> (i32, i32) {
    %c0_i32 = arith.constant 0 : i32
    %c0_i32_0 = arith.constant 0 : i32
    return %arg0, %c0_i32 : i32, i32
  }
}

</mosaic_0001>

<llo_original>
// kernel: tpu_custom_call.1
$region0: #{tpu_custom_call.1}
  #allocation0 [shape = 'u32[]', space=smem, size = 0x4, offset = 0x4, fixed_abs, tag = 'smem constant byte address 0x4 - core index']
  #allocation1 [shape = 'u32[144,128]{1,0:T(1,128)}', space=vmem, size = 0x12000, scoped, tag = 'internal scratch']
  #allocation2 [shape = 's32[1]{0}', space=sflag, size = 0x4, scoped, tag = 'scoped memory for tpu_custom_call.1']
  #allocation3 [shape = 'u8[512]{0}', space=smem, size = 0x200, scoped, tag = 'prefetched SMEM operand 0']
  #allocation4 [shape = 'u8[512]{0}', space=smem, size = 0x200, scoped, tag = 'prefetched SMEM operand 1']
  %s0 = inlined_call_operand.hbm [shape: s32[3], index: 0, kind: input, shape index: {}]
  %s1 = inlined_call_operand.vmem [shape: s32[3], index: 1, kind: input, shape index: {}]
  %s2 = inlined_call_operand.hbm [shape: s32[24,256], index: 2, kind: output, shape index: {}]
  %s3 = sld [smem:[#allocation0]]
  $region25: #{tpu_custom_call.1} parent=0
    _
  %s5 = ssub.s32 1, %s3
  %s6 = scalar_select 0, %s5, %s3
  %8 = dma.hbm_to_smem %s0, 16, [#allocation3], [#allocation2]
  %s9 = sshll.u32 %s1, 4
  %s10 = int_to_ptr.vmem [resolvable:$true] %s9
  %12 = dma.vmem_to_smem %s10, 16, [#allocation4], [#allocation2]
  %13 = dma.done [#allocation2], 32
  %14 = sfence
  $region1: #{tpu_custom_call.1} parent=0
    #allocation5 [shape = 'u8[16384]{0}', space=vmem, size = 0x4000, scoped, tag = 'output window, operand 0']
    #allocation6 [shape = 's32[2]{0}', space=sflag, size = 0x8, scoped, tag = 'scoped memory for tpu_custom_call.1']
    %15 = vsyncpa [#allocation6], 0
    %s16 = scalar_lea.sflag [#allocation6], 1
    %17 = vsyncpa %s16, 0
    loop: start=0, step=1, limit=4
    $region2: #{tpu_custom_call.1} parent=1 // loop_pre_header
      _
    $region3: #{tpu_custom_call.1} parent=1 // loop_header
      %s19 = sphi 0, %s23
      %p20 = scmp.ge.s32.totalorder %s19, 4
      %s28 = sphi 0, %s30
      %s31 = sphi 0, %s28
      %s41 = sphi 0, %s31
    $region4: #{tpu_custom_call.1} parent=1 // loop_header_branch
      %22 = sbr.rel (%p20) target = $region8
    $region5: #{tpu_custom_call.1} parent=1 // loop_body
      %s24 = ssub.s32 %s19, 1
      %s25 = sadd.s32 %s19, 1
      %s26 = ssub.s32 %s19, %s25
      %p27 = scmp.eq.s32.totalorder %s26, 0
      %s29 = sadd.s32 %s28, 1
      %s30 = scalar_select %p27, %s28, %s29
      %p32 = pneg %p27
      %p33 = scmp.eq.s32.totalorder %s19, 2
      %p34 = por %p32, %p33
      %p35 = scmp.ne.s32.totalorder %s28, %s31
      %p36 = scmp.eq.s32.totalorder %s19, 0
      %p37 = por %p35, %p36
      %p38 = scmp.ne.s32.totalorder %s28, %s31
      %p39 = scmp.eq.s32.totalorder %s24, 2
      %p40 = por %p38, %p39
      %p42 = scmp.ne.s32.totalorder %s31, %s41
      %p43 = scmp.eq.s32.totalorder %s24, 0
      %p44 = por %p42, %p43
      %p45 = scmp.lt.s32.totalorder %s19, 3
      // Predicated region
      $region9: #{tpu_custom_call.1} parent=5 // pred_check
        %p46 = pneg %p45
      $region10: #{tpu_custom_call.1} parent=5 // pred_check_branch
        %48 = sbr.rel (%p46) target = $region12
      $region11: #{tpu_custom_call.1} parent=5 // pred_region
        %p49 = pneg %p37
        %p50 = pneg %p34
        %s51 = sand.u32 %s28, 1
        %s52 = scalar_lea.sflag [#allocation6], %s51
        %s53 = sand.u32 %s28, 1
        %s54 = smul.addr %s53, 16
        %s55 = scalar_lea.vmem [#allocation5], %s54
        %s56 = sld [smem:[#allocation3 + %s19]]
        %s57 = sld [smem:[#allocation4 + %s19]]
        %v58 = vlaneseq
        %v59 = vshrl.u32 %v58, 7
        %v60 = vstv %s57
        %v61 = vadd.s32 %v60, %v59
        %v62 = vlaneseq
        %v63 = vand.u32 %v62, 127
        %v64 = vstv %s56
        %v65 = vadd.s32 %v61, %v64
        %66 = vst [vmem:[%s55] sm:$0xff] %v65
        %v67 = vadd.s32 %v63, %v64
        %vm68 = vcmp.ge.s32.totalorder %v63, %v61
        %v69 = vsel %vm68, 1, 0
        %v70 = vadd.s32 %v67, %v69
        %71 = vst [vmem:[%s55 + $0x8] sm:$0xff] %v70
        %s72 = sand.u32 %s28, 1
        %s73 = scalar_lea.sflag [#allocation6], %s72
        %s74 = sand.u32 %s28, 1
        %s75 = smul.addr %s74, 16
        %s76 = scalar_lea.vmem [#allocation5], %s75
        // Predicated region
        $region13: #{tpu_custom_call.1} parent=11 // pred_check
          %p77 = pneg %p34
        $region14: #{tpu_custom_call.1} parent=11 // pred_check_branch
          %79 = sbr.rel (%p77) target = $region16
        $region15: #{tpu_custom_call.1} parent=11 // pred_region
          %s81 = ssub.s32 256, 256
          %82 = vsyncadd %s73, %s81
          %s83 = smul.addr %s19, 2
          %s84 = smul.addr %s83, 128
          %s85 = scalar_lea.hbm %s2, %s84
          %s87 = sshll.u32 %s76, 4
          %s88 = int_to_ptr.vmem [resolvable:$true] %s87
          %90 = dma.vmem_to_hbm [thread:$0]  %s88, 256, %s85, %s73
        $region16: #{tpu_custom_call.1} parent=11 // pred_fallthru
          _
      $region12: #{tpu_custom_call.1} parent=5 // pred_fallthru
        _
      %p91 = scmp.le.s32.totalorder 1, %s19
      // Predicated region
      $region17: #{tpu_custom_call.1} parent=5 // pred_check
        %p92 = pneg %p91
      $region18: #{tpu_custom_call.1} parent=5 // pred_check_branch
        %94 = sbr.rel (%p92) target = $region20
      $region19: #{tpu_custom_call.1} parent=5 // pred_region
        %s95 = ssub.s32 %s19, 1
        // Predicated region
        $region21: #{tpu_custom_call.1} parent=19 // pred_check
          %p96 = pneg %p40
        $region22: #{tpu_custom_call.1} parent=19 // pred_check_branch
          %98 = sbr.rel (%p96) target = $region24
        $region23: #{tpu_custom_call.1} parent=19 // pred_region
          %s99 = sand.u32 %s31, 1
          %s100 = scalar_lea.sflag [#allocation6], %s99
          %s101 = sand.u32 %s31, 1
          %s102 = smul.addr %s101, 16
          %s103 = scalar_lea.vmem [#allocation5], %s102
          %104 = dma.done %s100, 256
        $region24: #{tpu_custom_call.1} parent=19 // pred_fallthru
          _
      $region20: #{tpu_custom_call.1} parent=5 // pred_fallthru
        _
    $region6: #{tpu_custom_call.1} parent=1 // loop_footer
      %s23 = sadd.s32 1, %s19
    $region7: #{tpu_custom_call.1} parent=1 // loop_footer_branch
      %18 = sbr.rel target = $region3
    $region8: #{tpu_custom_call.1} parent=1 // loop_exit
      _
    %105 = vsyncpa [#allocation6], 1
    %s106 = scalar_lea.sflag [#allocation6], 1
    %107 = vsyncpa %s106, 1

</llo_original>
